<compile_context>
chip_gen: v6e
topology: v6e:2x2x1
jax: 0.10.0
libtpu: 0.0.40
codegen_flags: <defaults>
</compile_context>

<pallas_src>
import jax
import jax.numpy as jnp
from jax import lax
from jax.experimental import pallas as pl
from jax.experimental.pallas import tpu as pltpu

EPS = 1e-6   # Python float -> compile-time constant inside the kernel


def _quat_tran_rows(ref):
    """ref: (16, N) VMEM ref of row-major flattened SE(3) poses, batch on the
    lane axis.  Returns quaternion and translation components as lane-dense
    (1, N) float32 rows.  One whole-tile load + upcast (cheap for bf16 too),
    one fused rsqrt (single EUP push) for the whole slab."""
    m = ref[...].astype(jnp.float32)          # single load + upcast
    r = lambda i: m[i:i + 1, :]               # static sublane-row slice
    r00, r01, r02, tx = r(0), r(1), r(2), r(3)
    r10, r11, r12, ty = r(4), r(5), r(6), r(7)
    r20, r21, r22, tz = r(8), r(9), r(10), r(11)
    # Fused conversion: qw = 0.5*sqrt(tr), 1/(4*qw) == 0.5*rsqrt(tr)
    tr = jnp.maximum(1.0 + r00 + r11 + r22, EPS)
    inv = 0.5 * lax.rsqrt(tr)                 # one EUP push per slab
    qw = tr * inv                             # == 0.5*sqrt(tr)
    qx = (r21 - r12) * inv
    qy = (r02 - r20) * inv
    qz = (r10 - r01) * inv
    return (qw, qx, qy, qz), (tx, ty, tz)


def _make_hws_kernel(S, B):
    """Kernel for a static number of scales S and batch size B."""
    # Plain Python floats -> baked into the trace (fixes captured-constant err)
    inv_nq = 1.0 / (B * 4)    # 1 / numel(quaternion tensor)
    inv_nt = 1.0 / (B * 3)    # 1 / numel(translation tensor)
    SB = S * B

    def kernel(params_ref, weight_ref, pred_ref, tgt_ref,
               loss_ref, lt_ref, lq_ref, lsum_ref):
        # params_ref : SMEM (4,)      [sx, sq, exp(-sx), exp(-sq)]
        # weight_ref : SMEM (S,)      per-scale weights
        # pred_ref   : VMEM (16, S*B) all predictions, lane index = s*B + b
        # tgt_ref    : VMEM (16, S*B) target tiled S times along lanes
        sx = params_ref[0]
        sq = params_ref[1]
        exp_nsx = params_ref[2]
        exp_nsq = params_ref[3]

        # One conversion pass per slab (all scales at once).
        (qw_p, qx_p, qy_p, qz_p), (tx_p, ty_p, tz_p) = _quat_tran_rows(pred_ref)
        (qw_g, qx_g, qy_g, qz_g), (tx_g, ty_g, tz_g) = _quat_tran_rows(tgt_ref)

        # Full-width per-element errors, shape (1, S*B).
        dq2 = ((qw_p - qw_g) ** 2 + (qx_p - qx_g) ** 2 +
               (qy_p - qy_g) ** 2 + (qz_p - qz_g) ** 2)
        dt = (jnp.abs(tx_p - tx_g) + jnp.abs(ty_p - ty_g) +
              jnp.abs(tz_p - tz_g))

        # Per-scale masked reductions: avoids unaligned lane slices, stays on
        # full vregs (VALU select + reduce), S is tiny so the unrolled loop is
        # negligible work.
        lane = lax.broadcasted_iota(jnp.int32, (1, SB), 1)
        zero = jnp.zeros_like(dq2)
        total = 0.0
        for s in range(S):                     # static unrolled loop
            in_scale = (lane >= s * B) & (lane < (s + 1) * B)
            loss_q = jnp.sum(jnp.where(in_scale, dq2, zero)) * inv_nq
            loss_t = jnp.sum(jnp.where(in_scale, dt, zero)) * inv_nt
            loss_sum = exp_nsx * loss_t + sx + exp_nsq * loss_q + sq

            lt_ref[s] = loss_t
            lq_ref[s] = loss_q
            lsum_ref[s] = loss_sum
            total = total + weight_ref[s] * loss_sum

        loss_ref[0] = total

    return kernel


def scale_hws_loss(network_output, target, sx=0.0, sq=-2.5, weight=None):
    """JAX/Pallas equivalent of scaleHWSLoss.forward.

    Returns (loss, loss_t, loss_q, loss_sum) with the per-scale values as
    (S,) arrays (index i == i-th list entry of the PyTorch module)."""
    if not isinstance(network_output, (list, tuple)):
        network_output = [network_output]
    if weight is None:
        weight = [1.6, 0.8, 0.4, 0.2, 0.1]
    assert len(weight) == len(network_output)

    S = len(network_output)
    B = target.shape[0]

    # Single lane-packed prediction slab (16, S*B): one concatenate + one
    # transpose in the wrapper, one input DMA into the kernel.  Native dtype
    # is kept; the kernel upcasts once per slab.
    preds = jnp.transpose(jnp.concatenate(
        [jnp.reshape(o, (B, 16)) for o in network_output], axis=0))
    # Target tiled across the S scale blocks so the in-kernel diff is a plain
    # full-width subtract (no in-kernel broadcast / concat needed).
    tgt = jnp.transpose(jnp.tile(jnp.reshape(target, (B, 16)), (S, 1)))

    sx32 = jnp.asarray(sx, jnp.float32)
    sq32 = jnp.asarray(sq, jnp.float32)
    # exp() in the wrapper: constant-folded / fused by XLA; the TPU scalar
    # core has no transcendental unit, so in-kernel scalar exp gains nothing.
    params = jnp.stack([sx32, sq32, jnp.exp(-sx32), jnp.exp(-sq32)])   # (4,)
    w = jnp.asarray(weight, dtype=jnp.float32)                         # (S,)

    out_shapes = (
        jax.ShapeDtypeStruct((1,), jnp.float32),   # total loss
        jax.ShapeDtypeStruct((S,), jnp.float32),   # loss_t per scale
        jax.ShapeDtypeStruct((S,), jnp.float32),   # loss_q per scale
        jax.ShapeDtypeStruct((S,), jnp.float32),   # loss_sum per scale
    )

    smem = pl.BlockSpec(memory_space=pltpu.MemorySpace.SMEM)
    vmem = pl.BlockSpec(memory_space=pltpu.MemorySpace.VMEM)

    loss, lt, lq, lsum = pl.pallas_call(
        _make_hws_kernel(S, B),
        out_shape=out_shapes,
        in_specs=[smem, smem, vmem, vmem],
        out_specs=(smem, smem, smem, smem),
    )(params, w, preds, tgt)

    return loss[0], lt, lq, lsum


# ---------------------------------------------------------------------------
# Pure-JAX reference (same math) for a correctness check.
def _ref_loss(network_output, target, sx, sq, weight):
    def t2qt(T):
        R = T[:, :3, :3]
        t = T[:, :3, 3]
        qw = 0.5 * jnp.sqrt(jnp.maximum(
            1.0 + R[:, 0, 0] + R[:, 1, 1] + R[:, 2, 2], EPS))
        qx = (R[:, 2, 1] - R[:, 1, 2]) / (4 * qw)
        qy = (R[:, 0, 2] - R[:, 2, 0]) / (4 * qw)
        qz = (R[:, 1, 0] - R[:, 0, 1]) / (4 * qw)
        return jnp.stack([qw, qx, qy, qz], -1), t

    q_gt, t_gt = t2qt(target)
    loss = 0.0
    lts, lqs, lss = [], [], []
    for i, o in enumerate(network_output):
        q, t = t2qt(o)
        lq = jnp.mean((q - q_gt) ** 2)
        lt = jnp.mean(jnp.abs(t - t_gt))
        ls = jnp.exp(-sx) * lt + sx + jnp.exp(-sq) * lq + sq
        loss = loss + weight[i] * ls
        lts.append(lt), lqs.append(lq), lss.append(ls)
    return loss, lts, lqs, lss


def _quat_to_rotmat(q):
    q = q / jnp.linalg.norm(q, axis=-1, keepdims=True)
    w, x, y, z = q[..., 0], q[..., 1], q[..., 2], q[..., 3]
    R = jnp.stack([
        1 - 2 * (y * y + z * z), 2 * (x * y - z * w), 2 * (x * z + y * w),
        2 * (x * y + z * w), 1 - 2 * (x * x + z * z), 2 * (y * z - x * w),
        2 * (x * z - y * w), 2 * (y * z + x * w), 1 - 2 * (x * x + y * y)],
        axis=-1).reshape(q.shape[:-1] + (3, 3))
    return R


def _make_T(key, B):
    k1, k2 = jax.random.split(key)
    # small rotations (dominant w) so the trace-based conversion is well-posed
    q = jnp.concatenate(
        [jnp.ones((B, 1)), 0.2 * jax.random.normal(k1, (B, 3))], axis=-1)
    R = _quat_to_rotmat(q)
    t = jax.random.normal(k2, (B, 3))
    T = jnp.zeros((B, 4, 4), jnp.float32)
    T = T.at[:, :3, :3].set(R)
    T = T.at[:, :3, 3].set(t)
    T = T.at[:, 3, 3].set(1.0)
    return T


if __name__ == "__main__":
    key = jax.random.PRNGKey(0)
    B, S = 8, 5
    keys = jax.random.split(key, S + 1)
    target = _make_T(keys[0], B)
    network_output = [_make_T(keys[i + 1], B) for i in range(S)]

    sx, sq = 0.0, -2.5
    weight = [1.6, 0.8, 0.4, 0.2, 0.1]

    loss, lt, lq, lsum = scale_hws_loss(
        network_output, target, sx=sx, sq=sq, weight=weight)
    jax.block_until_ready((loss, lt, lq, lsum))

    # sanity check against the pure-JAX reference
    ref_loss, ref_lt, ref_lq, ref_ls = _ref_loss(
        network_output, target, sx, sq, weight)
    assert jnp.allclose(loss, ref_loss, rtol=1e-3, atol=1e-4), (loss, ref_loss)
    assert jnp.allclose(lt, jnp.stack(ref_lt), rtol=1e-3, atol=1e-4)
    assert jnp.allclose(lq, jnp.stack(ref_lq), rtol=1e-3, atol=1e-4)
    assert jnp.allclose(lsum, jnp.stack(ref_ls), rtol=1e-3, atol=1e-4)

    print("KERNEL_OK")
</pallas_src>

<mosaic_0001>
module attributes {stable_mosaic.version = 11 : i64} {
  func.func @kernel(%arg0: memref<4xf32, #tpu.memory_space<smem>>, %arg1: memref<5xf32, #tpu.memory_space<smem>>, %arg2: memref<16x40xf32, #tpu.memory_space<vmem>>, %arg3: memref<16x40xf32, #tpu.memory_space<vmem>>, %arg4: memref<1xf32, #tpu.memory_space<smem>>, %arg5: memref<5xf32, #tpu.memory_space<smem>>, %arg6: memref<5xf32, #tpu.memory_space<smem>>, %arg7: memref<5xf32, #tpu.memory_space<smem>>) attributes {dimension_semantics = [], scalar_prefetch = 0 : i64, scratch_operands = 0 : i64, tpu.core_type = #tpu.core_type<tc>} {
    %c0 = arith.constant 0 : index
    %0 = memref.load %arg0[%c0] : memref<4xf32, #tpu.memory_space<smem>>
    %c1 = arith.constant 1 : index
    %1 = memref.load %arg0[%c1] : memref<4xf32, #tpu.memory_space<smem>>
    %c2 = arith.constant 2 : index
    %2 = memref.load %arg0[%c2] : memref<4xf32, #tpu.memory_space<smem>>
    %c3 = arith.constant 3 : index
    %3 = memref.load %arg0[%c3] : memref<4xf32, #tpu.memory_space<smem>>
    %c0_0 = arith.constant 0 : index
    %c0_1 = arith.constant 0 : index
    %4 = vector.load %arg2[%c0_0, %c0_1] : memref<16x40xf32, #tpu.memory_space<vmem>>, vector<16x40xf32>
    %5 = vector.extract_strided_slice %4 {offsets = [0, 0], sizes = [1, 40], strides = [1, 1]} : vector<16x40xf32> to vector<1x40xf32>
    %6 = vector.extract_strided_slice %4 {offsets = [1, 0], sizes = [1, 40], strides = [1, 1]} : vector<16x40xf32> to vector<1x40xf32>
    %7 = vector.extract_strided_slice %4 {offsets = [2, 0], sizes = [1, 40], strides = [1, 1]} : vector<16x40xf32> to vector<1x40xf32>
    %8 = vector.extract_strided_slice %4 {offsets = [3, 0], sizes = [1, 40], strides = [1, 1]} : vector<16x40xf32> to vector<1x40xf32>
    %9 = vector.extract_strided_slice %4 {offsets = [4, 0], sizes = [1, 40], strides = [1, 1]} : vector<16x40xf32> to vector<1x40xf32>
    %10 = vector.extract_strided_slice %4 {offsets = [5, 0], sizes = [1, 40], strides = [1, 1]} : vector<16x40xf32> to vector<1x40xf32>
    %11 = vector.extract_strided_slice %4 {offsets = [6, 0], sizes = [1, 40], strides = [1, 1]} : vector<16x40xf32> to vector<1x40xf32>
    %12 = vector.extract_strided_slice %4 {offsets = [7, 0], sizes = [1, 40], strides = [1, 1]} : vector<16x40xf32> to vector<1x40xf32>
    %13 = vector.extract_strided_slice %4 {offsets = [8, 0], sizes = [1, 40], strides = [1, 1]} : vector<16x40xf32> to vector<1x40xf32>
    %14 = vector.extract_strided_slice %4 {offsets = [9, 0], sizes = [1, 40], strides = [1, 1]} : vector<16x40xf32> to vector<1x40xf32>
    %15 = vector.extract_strided_slice %4 {offsets = [10, 0], sizes = [1, 40], strides = [1, 1]} : vector<16x40xf32> to vector<1x40xf32>
    %16 = vector.extract_strided_slice %4 {offsets = [11, 0], sizes = [1, 40], strides = [1, 1]} : vector<16x40xf32> to vector<1x40xf32>
    %cst = arith.constant 1.000000e+00 : f32
    %17 = vector.broadcast %cst : f32 to vector<1x40xf32>
    %18 = arith.addf %17, %5 : vector<1x40xf32>
    %19 = arith.addf %18, %10 : vector<1x40xf32>
    %20 = arith.addf %19, %15 : vector<1x40xf32>
    %cst_2 = arith.constant 9.99999997E-7 : f32
    %21 = vector.broadcast %cst_2 : f32 to vector<1x40xf32>
    %22 = arith.maximumf %20, %21 : vector<1x40xf32>
    %23 = math.rsqrt %22 : vector<1x40xf32>
    %cst_3 = arith.constant 5.000000e-01 : f32
    %24 = vector.broadcast %cst_3 : f32 to vector<1x40xf32>
    %25 = arith.mulf %24, %23 : vector<1x40xf32>
    %26 = arith.mulf %22, %25 : vector<1x40xf32>
    %27 = arith.subf %14, %11 : vector<1x40xf32>
    %28 = arith.mulf %27, %25 : vector<1x40xf32>
    %29 = arith.subf %7, %13 : vector<1x40xf32>
    %30 = arith.mulf %29, %25 : vector<1x40xf32>
    %31 = arith.subf %9, %6 : vector<1x40xf32>
    %32 = arith.mulf %31, %25 : vector<1x40xf32>
    %c0_4 = arith.constant 0 : index
    %c0_5 = arith.constant 0 : index
    %33 = vector.load %arg3[%c0_4, %c0_5] : memref<16x40xf32, #tpu.memory_space<vmem>>, vector<16x40xf32>
    %34 = vector.extract_strided_slice %33 {offsets = [0, 0], sizes = [1, 40], strides = [1, 1]} : vector<16x40xf32> to vector<1x40xf32>
    %35 = vector.extract_strided_slice %33 {offsets = [1, 0], sizes = [1, 40], strides = [1, 1]} : vector<16x40xf32> to vector<1x40xf32>
    %36 = vector.extract_strided_slice %33 {offsets = [2, 0], sizes = [1, 40], strides = [1, 1]} : vector<16x40xf32> to vector<1x40xf32>
    %37 = vector.extract_strided_slice %33 {offsets = [3, 0], sizes = [1, 40], strides = [1, 1]} : vector<16x40xf32> to vector<1x40xf32>
    %38 = vector.extract_strided_slice %33 {offsets = [4, 0], sizes = [1, 40], strides = [1, 1]} : vector<16x40xf32> to vector<1x40xf32>
    %39 = vector.extract_strided_slice %33 {offsets = [5, 0], sizes = [1, 40], strides = [1, 1]} : vector<16x40xf32> to vector<1x40xf32>
    %40 = vector.extract_strided_slice %33 {offsets = [6, 0], sizes = [1, 40], strides = [1, 1]} : vector<16x40xf32> to vector<1x40xf32>
    %41 = vector.extract_strided_slice %33 {offsets = [7, 0], sizes = [1, 40], strides = [1, 1]} : vector<16x40xf32> to vector<1x40xf32>
    %42 = vector.extract_strided_slice %33 {offsets = [8, 0], sizes = [1, 40], strides = [1, 1]} : vector<16x40xf32> to vector<1x40xf32>
    %43 = vector.extract_strided_slice %33 {offsets = [9, 0], sizes = [1, 40], strides = [1, 1]} : vector<16x40xf32> to vector<1x40xf32>
    %44 = vector.extract_strided_slice %33 {offsets = [10, 0], sizes = [1, 40], strides = [1, 1]} : vector<16x40xf32> to vector<1x40xf32>
    %45 = vector.extract_strided_slice %33 {offsets = [11, 0], sizes = [1, 40], strides = [1, 1]} : vector<16x40xf32> to vector<1x40xf32>
    %cst_6 = arith.constant 1.000000e+00 : f32
    %46 = vector.broadcast %cst_6 : f32 to vector<1x40xf32>
    %47 = arith.addf %46, %34 : vector<1x40xf32>
    %48 = arith.addf %47, %39 : vector<1x40xf32>
    %49 = arith.addf %48, %44 : vector<1x40xf32>
    %cst_7 = arith.constant 9.99999997E-7 : f32
    %50 = vector.broadcast %cst_7 : f32 to vector<1x40xf32>
    %51 = arith.maximumf %49, %50 : vector<1x40xf32>
    %52 = math.rsqrt %51 : vector<1x40xf32>
    %cst_8 = arith.constant 5.000000e-01 : f32
    %53 = vector.broadcast %cst_8 : f32 to vector<1x40xf32>
    %54 = arith.mulf %53, %52 : vector<1x40xf32>
    %55 = arith.mulf %51, %54 : vector<1x40xf32>
    %56 = arith.subf %43, %40 : vector<1x40xf32>
    %57 = arith.mulf %56, %54 : vector<1x40xf32>
    %58 = arith.subf %36, %42 : vector<1x40xf32>
    %59 = arith.mulf %58, %54 : vector<1x40xf32>
    %60 = arith.subf %38, %35 : vector<1x40xf32>
    %61 = arith.mulf %60, %54 : vector<1x40xf32>
    %62 = arith.subf %26, %55 : vector<1x40xf32>
    %63 = arith.mulf %62, %62 : vector<1x40xf32>
    %64 = arith.subf %28, %57 : vector<1x40xf32>
    %65 = arith.mulf %64, %64 : vector<1x40xf32>
    %66 = arith.addf %63, %65 : vector<1x40xf32>
    %67 = arith.subf %30, %59 : vector<1x40xf32>
    %68 = arith.mulf %67, %67 : vector<1x40xf32>
    %69 = arith.addf %66, %68 : vector<1x40xf32>
    %70 = arith.subf %32, %61 : vector<1x40xf32>
    %71 = arith.mulf %70, %70 : vector<1x40xf32>
    %72 = arith.addf %69, %71 : vector<1x40xf32>
    %73 = arith.subf %8, %37 : vector<1x40xf32>
    %74 = math.absf %73 : vector<1x40xf32>
    %75 = arith.subf %12, %41 : vector<1x40xf32>
    %76 = math.absf %75 : vector<1x40xf32>
    %77 = arith.addf %74, %76 : vector<1x40xf32>
    %78 = arith.subf %16, %45 : vector<1x40xf32>
    %79 = math.absf %78 : vector<1x40xf32>
    %80 = arith.addf %77, %79 : vector<1x40xf32>
    %81 = tpu.iota {dimensions = array<i32: 1>} : vector<1x40xi32>
    %cst_9 = arith.constant 0.000000e+00 : f32
    %82 = vector.broadcast %cst_9 : f32 to vector<1x40xf32>
    %c0_i32 = arith.constant 0 : i32
    %83 = vector.broadcast %c0_i32 : i32 to vector<1x40xi32>
    %84 = arith.cmpi sge, %81, %83 : vector<1x40xi32>
    %c8_i32 = arith.constant 8 : i32
    %85 = vector.broadcast %c8_i32 : i32 to vector<1x40xi32>
    %86 = arith.cmpi slt, %81, %85 : vector<1x40xi32>
    %87 = arith.andi %84, %86 : vector<1x40xi1>
    %88 = arith.select %87, %72, %82 : vector<1x40xi1>, vector<1x40xf32>
    %89 = vector.shape_cast %88 : vector<1x40xf32> to vector<1x1x40xf32>
    %cst_10 = arith.constant dense<0.000000e+00> : vector<1xf32>
    %90 = vector.multi_reduction <add>, %89, %cst_10 [1, 2] : vector<1x1x40xf32> to vector<1xf32>
    %91 = vector.shape_cast %90 : vector<1xf32> to vector<1x1x1xf32>
    %92 = vector.extract %91[0, 0, 0] : f32 from vector<1x1x1xf32>
    %cst_11 = arith.constant 3.125000e-02 : f32
    %93 = arith.mulf %92, %cst_11 : f32
    %94 = arith.select %87, %80, %82 : vector<1x40xi1>, vector<1x40xf32>
    %95 = vector.shape_cast %94 : vector<1x40xf32> to vector<1x1x40xf32>
    %cst_12 = arith.constant dense<0.000000e+00> : vector<1xf32>
    %96 = vector.multi_reduction <add>, %95, %cst_12 [1, 2] : vector<1x1x40xf32> to vector<1xf32>
    %97 = vector.shape_cast %96 : vector<1xf32> to vector<1x1x1xf32>
    %98 = vector.extract %97[0, 0, 0] : f32 from vector<1x1x1xf32>
    %cst_13 = arith.constant 0.0416666679 : f32
    %99 = arith.mulf %98, %cst_13 : f32
    %100 = arith.mulf %2, %99 : f32
    %101 = arith.addf %100, %0 : f32
    %102 = arith.mulf %3, %93 : f32
    %103 = arith.addf %101, %102 : f32
    %104 = arith.addf %103, %1 : f32
    %c0_14 = arith.constant 0 : index
    %105 = memref.load %arg5[%c0_14] : memref<5xf32, #tpu.memory_space<smem>>
    memref.store %99, %arg5[%c0_14] : memref<5xf32, #tpu.memory_space<smem>>
    %c0_15 = arith.constant 0 : index
    %106 = memref.load %arg6[%c0_15] : memref<5xf32, #tpu.memory_space<smem>>
    memref.store %93, %arg6[%c0_15] : memref<5xf32, #tpu.memory_space<smem>>
    %c0_16 = arith.constant 0 : index
    %107 = memref.load %arg7[%c0_16] : memref<5xf32, #tpu.memory_space<smem>>
    memref.store %104, %arg7[%c0_16] : memref<5xf32, #tpu.memory_space<smem>>
    %c0_17 = arith.constant 0 : index
    %108 = memref.load %arg1[%c0_17] : memref<5xf32, #tpu.memory_space<smem>>
    %109 = arith.mulf %108, %104 : f32
    %cst_18 = arith.constant 0.000000e+00 : f32
    %110 = arith.addf %cst_18, %109 : f32
    %c8_i32_19 = arith.constant 8 : i32
    %111 = vector.broadcast %c8_i32_19 : i32 to vector<1x40xi32>
    %112 = arith.cmpi sge, %81, %111 : vector<1x40xi32>
    %c16_i32 = arith.constant 16 : i32
    %113 = vector.broadcast %c16_i32 : i32 to vector<1x40xi32>
    %114 = arith.cmpi slt, %81, %113 : vector<1x40xi32>
    %115 = arith.andi %112, %114 : vector<1x40xi1>
    %116 = arith.select %115, %72, %82 : vector<1x40xi1>, vector<1x40xf32>
    %117 = vector.shape_cast %116 : vector<1x40xf32> to vector<1x1x40xf32>
    %cst_20 = arith.constant dense<0.000000e+00> : vector<1xf32>
    %118 = vector.multi_reduction <add>, %117, %cst_20 [1, 2] : vector<1x1x40xf32> to vector<1xf32>
    %119 = vector.shape_cast %118 : vector<1xf32> to vector<1x1x1xf32>
    %120 = vector.extract %119[0, 0, 0] : f32 from vector<1x1x1xf32>
    %cst_21 = arith.constant 3.125000e-02 : f32
    %121 = arith.mulf %120, %cst_21 : f32
    %122 = arith.select %115, %80, %82 : vector<1x40xi1>, vector<1x40xf32>
    %123 = vector.shape_cast %122 : vector<1x40xf32> to vector<1x1x40xf32>
    %cst_22 = arith.constant dense<0.000000e+00> : vector<1xf32>
    %124 = vector.multi_reduction <add>, %123, %cst_22 [1, 2] : vector<1x1x40xf32> to vector<1xf32>
    %125 = vector.shape_cast %124 : vector<1xf32> to vector<1x1x1xf32>
    %126 = vector.extract %125[0, 0, 0] : f32 from vector<1x1x1xf32>
    %cst_23 = arith.constant 0.0416666679 : f32
    %127 = arith.mulf %126, %cst_23 : f32
    %128 = arith.mulf %2, %127 : f32
    %129 = arith.addf %128, %0 : f32
    %130 = arith.mulf %3, %121 : f32
    %131 = arith.addf %129, %130 : f32
    %132 = arith.addf %131, %1 : f32
    %c1_24 = arith.constant 1 : index
    %133 = memref.load %arg5[%c1_24] : memref<5xf32, #tpu.memory_space<smem>>
    memref.store %127, %arg5[%c1_24] : memref<5xf32, #tpu.memory_space<smem>>
    %c1_25 = arith.constant 1 : index
    %134 = memref.load %arg6[%c1_25] : memref<5xf32, #tpu.memory_space<smem>>
    memref.store %121, %arg6[%c1_25] : memref<5xf32, #tpu.memory_space<smem>>
    %c1_26 = arith.constant 1 : index
    %135 = memref.load %arg7[%c1_26] : memref<5xf32, #tpu.memory_space<smem>>
    memref.store %132, %arg7[%c1_26] : memref<5xf32, #tpu.memory_space<smem>>
    %c1_27 = arith.constant 1 : index
    %136 = memref.load %arg1[%c1_27] : memref<5xf32, #tpu.memory_space<smem>>
    %137 = arith.mulf %136, %132 : f32
    %138 = arith.addf %110, %137 : f32
    %c16_i32_28 = arith.constant 16 : i32
    %139 = vector.broadcast %c16_i32_28 : i32 to vector<1x40xi32>
    %140 = arith.cmpi sge, %81, %139 : vector<1x40xi32>
    %c24_i32 = arith.constant 24 : i32
    %141 = vector.broadcast %c24_i32 : i32 to vector<1x40xi32>
    %142 = arith.cmpi slt, %81, %141 : vector<1x40xi32>
    %143 = arith.andi %140, %142 : vector<1x40xi1>
    %144 = arith.select %143, %72, %82 : vector<1x40xi1>, vector<1x40xf32>
    %145 = vector.shape_cast %144 : vector<1x40xf32> to vector<1x1x40xf32>
    %cst_29 = arith.constant dense<0.000000e+00> : vector<1xf32>
    %146 = vector.multi_reduction <add>, %145, %cst_29 [1, 2] : vector<1x1x40xf32> to vector<1xf32>
    %147 = vector.shape_cast %146 : vector<1xf32> to vector<1x1x1xf32>
    %148 = vector.extract %147[0, 0, 0] : f32 from vector<1x1x1xf32>
    %cst_30 = arith.constant 3.125000e-02 : f32
    %149 = arith.mulf %148, %cst_30 : f32
    %150 = arith.select %143, %80, %82 : vector<1x40xi1>, vector<1x40xf32>
    %151 = vector.shape_cast %150 : vector<1x40xf32> to vector<1x1x40xf32>
    %cst_31 = arith.constant dense<0.000000e+00> : vector<1xf32>
    %152 = vector.multi_reduction <add>, %151, %cst_31 [1, 2] : vector<1x1x40xf32> to vector<1xf32>
    %153 = vector.shape_cast %152 : vector<1xf32> to vector<1x1x1xf32>
    %154 = vector.extract %153[0, 0, 0] : f32 from vector<1x1x1xf32>
    %cst_32 = arith.constant 0.0416666679 : f32
    %155 = arith.mulf %154, %cst_32 : f32
    %156 = arith.mulf %2, %155 : f32
    %157 = arith.addf %156, %0 : f32
    %158 = arith.mulf %3, %149 : f32
    %159 = arith.addf %157, %158 : f32
    %160 = arith.addf %159, %1 : f32
    %c2_33 = arith.constant 2 : index
    %161 = memref.load %arg5[%c2_33] : memref<5xf32, #tpu.memory_space<smem>>
    memref.store %155, %arg5[%c2_33] : memref<5xf32, #tpu.memory_space<smem>>
    %c2_34 = arith.constant 2 : index
    %162 = memref.load %arg6[%c2_34] : memref<5xf32, #tpu.memory_space<smem>>
    memref.store %149, %arg6[%c2_34] : memref<5xf32, #tpu.memory_space<smem>>
    %c2_35 = arith.constant 2 : index
    %163 = memref.load %arg7[%c2_35] : memref<5xf32, #tpu.memory_space<smem>>
    memref.store %160, %arg7[%c2_35] : memref<5xf32, #tpu.memory_space<smem>>
    %c2_36 = arith.constant 2 : index
    %164 = memref.load %arg1[%c2_36] : memref<5xf32, #tpu.memory_space<smem>>
    %165 = arith.mulf %164, %160 : f32
    %166 = arith.addf %138, %165 : f32
    %c24_i32_37 = arith.constant 24 : i32
    %167 = vector.broadcast %c24_i32_37 : i32 to vector<1x40xi32>
    %168 = arith.cmpi sge, %81, %167 : vector<1x40xi32>
    %c32_i32 = arith.constant 32 : i32
    %169 = vector.broadcast %c32_i32 : i32 to vector<1x40xi32>
    %170 = arith.cmpi slt, %81, %169 : vector<1x40xi32>
    %171 = arith.andi %168, %170 : vector<1x40xi1>
    %172 = arith.select %171, %72, %82 : vector<1x40xi1>, vector<1x40xf32>
    %173 = vector.shape_cast %172 : vector<1x40xf32> to vector<1x1x40xf32>
    %cst_38 = arith.constant dense<0.000000e+00> : vector<1xf32>
    %174 = vector.multi_reduction <add>, %173, %cst_38 [1, 2] : vector<1x1x40xf32> to vector<1xf32>
    %175 = vector.shape_cast %174 : vector<1xf32> to vector<1x1x1xf32>
    %176 = vector.extract %175[0, 0, 0] : f32 from vector<1x1x1xf32>
    %cst_39 = arith.constant 3.125000e-02 : f32
    %177 = arith.mulf %176, %cst_39 : f32
    %178 = arith.select %171, %80, %82 : vector<1x40xi1>, vector<1x40xf32>
    %179 = vector.shape_cast %178 : vector<1x40xf32> to vector<1x1x40xf32>
    %cst_40 = arith.constant dense<0.000000e+00> : vector<1xf32>
    %180 = vector.multi_reduction <add>, %179, %cst_40 [1, 2] : vector<1x1x40xf32> to vector<1xf32>
    %181 = vector.shape_cast %180 : vector<1xf32> to vector<1x1x1xf32>
    %182 = vector.extract %181[0, 0, 0] : f32 from vector<1x1x1xf32>
    %cst_41 = arith.constant 0.0416666679 : f32
    %183 = arith.mulf %182, %cst_41 : f32
    %184 = arith.mulf %2, %183 : f32
    %185 = arith.addf %184, %0 : f32
    %186 = arith.mulf %3, %177 : f32
    %187 = arith.addf %185, %186 : f32
    %188 = arith.addf %187, %1 : f32
    %c3_42 = arith.constant 3 : index
    %189 = memref.load %arg5[%c3_42] : memref<5xf32, #tpu.memory_space<smem>>
    memref.store %183, %arg5[%c3_42] : memref<5xf32, #tpu.memory_space<smem>>
    %c3_43 = arith.constant 3 : index
    %190 = memref.load %arg6[%c3_43] : memref<5xf32, #tpu.memory_space<smem>>
    memref.store %177, %arg6[%c3_43] : memref<5xf32, #tpu.memory_space<smem>>
    %c3_44 = arith.constant 3 : index
    %191 = memref.load %arg7[%c3_44] : memref<5xf32, #tpu.memory_space<smem>>
    memref.store %188, %arg7[%c3_44] : memref<5xf32, #tpu.memory_space<smem>>
    %c3_45 = arith.constant 3 : index
    %192 = memref.load %arg1[%c3_45] : memref<5xf32, #tpu.memory_space<smem>>
    %193 = arith.mulf %192, %188 : f32
    %194 = arith.addf %166, %193 : f32
    %c32_i32_46 = arith.constant 32 : i32
    %195 = vector.broadcast %c32_i32_46 : i32 to vector<1x40xi32>
    %196 = arith.cmpi sge, %81, %195 : vector<1x40xi32>
    %c40_i32 = arith.constant 40 : i32
    %197 = vector.broadcast %c40_i32 : i32 to vector<1x40xi32>
    %198 = arith.cmpi slt, %81, %197 : vector<1x40xi32>
    %199 = arith.andi %196, %198 : vector<1x40xi1>
    %200 = arith.select %199, %72, %82 : vector<1x40xi1>, vector<1x40xf32>
    %201 = vector.shape_cast %200 : vector<1x40xf32> to vector<1x1x40xf32>
    %cst_47 = arith.constant dense<0.000000e+00> : vector<1xf32>
    %202 = vector.multi_reduction <add>, %201, %cst_47 [1, 2] : vector<1x1x40xf32> to vector<1xf32>
    %203 = vector.shape_cast %202 : vector<1xf32> to vector<1x1x1xf32>
    %204 = vector.extract %203[0, 0, 0] : f32 from vector<1x1x1xf32>
    %cst_48 = arith.constant 3.125000e-02 : f32
    %205 = arith.mulf %204, %cst_48 : f32
    %206 = arith.select %199, %80, %82 : vector<1x40xi1>, vector<1x40xf32>
    %207 = vector.shape_cast %206 : vector<1x40xf32> to vector<1x1x40xf32>
    %cst_49 = arith.constant dense<0.000000e+00> : vector<1xf32>
    %208 = vector.multi_reduction <add>, %207, %cst_49 [1, 2] : vector<1x1x40xf32> to vector<1xf32>
    %209 = vector.shape_cast %208 : vector<1xf32> to vector<1x1x1xf32>
    %210 = vector.extract %209[0, 0, 0] : f32 from vector<1x1x1xf32>
    %cst_50 = arith.constant 0.0416666679 : f32
    %211 = arith.mulf %210, %cst_50 : f32
    %212 = arith.mulf %2, %211 : f32
    %213 = arith.addf %212, %0 : f32
    %214 = arith.mulf %3, %205 : f32
    %215 = arith.addf %213, %214 : f32
    %216 = arith.addf %215, %1 : f32
    %c4 = arith.constant 4 : index
    %217 = memref.load %arg5[%c4] : memref<5xf32, #tpu.memory_space<smem>>
    memref.store %211, %arg5[%c4] : memref<5xf32, #tpu.memory_space<smem>>
    %c4_51 = arith.constant 4 : index
    %218 = memref.load %arg6[%c4_51] : memref<5xf32, #tpu.memory_space<smem>>
    memref.store %205, %arg6[%c4_51] : memref<5xf32, #tpu.memory_space<smem>>
    %c4_52 = arith.constant 4 : index
    %219 = memref.load %arg7[%c4_52] : memref<5xf32, #tpu.memory_space<smem>>
    memref.store %216, %arg7[%c4_52] : memref<5xf32, #tpu.memory_space<smem>>
    %c4_53 = arith.constant 4 : index
    %220 = memref.load %arg1[%c4_53] : memref<5xf32, #tpu.memory_space<smem>>
    %221 = arith.mulf %220, %216 : f32
    %222 = arith.addf %194, %221 : f32
    %c0_54 = arith.constant 0 : index
    %223 = memref.load %arg4[%c0_54] : memref<1xf32, #tpu.memory_space<smem>>
    memref.store %222, %arg4[%c0_54] : memref<1xf32, #tpu.memory_space<smem>>
    return
  }
}

</mosaic_0001>

<llo_original>
// kernel: tpu_custom_call.1
$region0: #{tpu_custom_call.1}
  #allocation0 [shape = 'u32[]', space=smem, size = 0x4, offset = 0x4, fixed_abs, tag = 'smem constant byte address 0x4 - core index']
  #allocation1 [shape = 'u32[144,128]{1,0:T(1,128)}', space=vmem, size = 0x12000, scoped, tag = 'internal scratch']
  %s0 = inlined_call_operand.hbm [shape: f32[4], index: 0, kind: input, shape index: {}]
  %s1 = inlined_call_operand.vmem [shape: f32[5], index: 1, kind: input, shape index: {}]
  %s2 = inlined_call_operand.hbm [shape: f32[16,40], index: 2, kind: input, shape index: {}]
  %s3 = inlined_call_operand.hbm [shape: f32[16,40], index: 3, kind: input, shape index: {}]
  %s4 = inlined_call_operand.hbm [shape: f32[1], index: 4, kind: output, shape index: {0}]
  %s5 = inlined_call_operand.hbm [shape: f32[5], index: 5, kind: output, shape index: {1}]
  %s6 = inlined_call_operand.hbm [shape: f32[5], index: 6, kind: output, shape index: {2}]
  %s7 = inlined_call_operand.hbm [shape: f32[5], index: 7, kind: output, shape index: {3}]
  %8 = xla_tuple %s4, %s5, %s6, %s7
  %s9 = sld [smem:[#allocation0]]
  $region66: #{tpu_custom_call.1} parent=0
    _
  %s11 = ssub.s32 1, %s9
  %s12 = scalar_select 0, %s11, %s9
  $region1: #{tpu_custom_call.1} parent=0
    #allocation2 [shape = 'u8[512]{0}', space=smem, size = 0x200, scoped, tag = 'input window, operand 0, single buffered']
    #allocation3 [shape = 's32[1]{0}', space=sflag, size = 0x4, scoped, tag = 'scoped memory for tpu_custom_call.1']
    #allocation4 [shape = 's32[1]{0}', space=sflag, size = 0x4, scoped, tag = 'scoped memory for tpu_custom_call.1']
    #allocation5 [shape = 's32[1]{0}', space=sflag, size = 0x4, scoped, tag = 'scoped memory for tpu_custom_call.1']
    #allocation6 [shape = 's32[1]{0}', space=sflag, size = 0x4, scoped, tag = 'scoped memory for tpu_custom_call.1']
    #allocation7 [shape = 'u8[512]{0}', space=smem, size = 0x200, scoped, tag = 'input window, operand 1, single buffered']
    #allocation8 [shape = 'u8[8192]{0}', space=vmem, size = 0x2000, scoped, tag = 'input window, operand 2, single buffered']
    #allocation9 [shape = 'u8[8192]{0}', space=vmem, size = 0x2000, scoped, tag = 'input window, operand 3, single buffered']
    #allocation10 [shape = 's32[1]{0}', space=sflag, size = 0x4, scoped, tag = 'scoped memory for tpu_custom_call.1']
    #allocation11 [shape = 'u8[512]{0}', space=smem, size = 0x200, scoped, tag = 'output window, operand 0, single buffered']
    #allocation12 [shape = 'u8[512]{0}', space=smem, size = 0x200, scoped, tag = 'output window, operand 1, single buffered']
    #allocation13 [shape = 's32[1]{0}', space=sflag, size = 0x4, scoped, tag = 'scoped memory for tpu_custom_call.1']
    #allocation14 [shape = 'u8[512]{0}', space=smem, size = 0x200, scoped, tag = 'output window, operand 2, single buffered']
    #allocation15 [shape = 'u8[512]{0}', space=smem, size = 0x200, scoped, tag = 'output window, operand 3, single buffered']
    #allocation16 [shape = 's32[1]{0}', space=sflag, size = 0x4, scoped, tag = 'scoped memory for tpu_custom_call.1']
    %13 = vsyncpa [#allocation4], 0
    %14 = vsyncpa [#allocation6], 0
    %15 = vsyncpa [#allocation3], 0
    %16 = vsyncpa [#allocation10], 0
    %17 = vsyncpa [#allocation5], 0
    %18 = vsyncpa [#allocation13], 0
    %19 = vsyncpa [#allocation16], 0
    // Predicated region
    $region2: #{tpu_custom_call.1} parent=1 // pred_check
      _
    $region3: #{tpu_custom_call.1} parent=1 // pred_check_branch
      %21 = sbr.rel (0) target = $region5
    $region4: #{tpu_custom_call.1} parent=1 // pred_region
      %s23 = ssub.s32 16, 16
      %24 = vsyncadd [#allocation4], %s23
      %27 = dma.hbm_to_smem %s0, 16, [#allocation2], [#allocation4]
    $region5: #{tpu_custom_call.1} parent=1 // pred_fallthru
      _
    // Predicated region
    $region6: #{tpu_custom_call.1} parent=1 // pred_check
      _
    $region7: #{tpu_custom_call.1} parent=1 // pred_check_branch
      %29 = sbr.rel (0) target = $region9
    $region8: #{tpu_custom_call.1} parent=1 // pred_region
      %s31 = ssub.s32 16, 16
      %32 = vsyncadd [#allocation6], %s31
      %s34 = sshll.u32 %s1, 4
      %s35 = int_to_ptr.vmem [resolvable:$true] %s34
      %37 = dma.vmem_to_smem %s35, 16, [#allocation7], [#allocation6]
    $region9: #{tpu_custom_call.1} parent=1 // pred_fallthru
      _
    // Predicated region
    $region10: #{tpu_custom_call.1} parent=1 // pred_check
      _
    $region11: #{tpu_custom_call.1} parent=1 // pred_check_branch
      %39 = sbr.rel (0) target = $region13
    $region12: #{tpu_custom_call.1} parent=1 // pred_region
      %s41 = ssub.s32 256, 256
      %42 = vsyncadd [#allocation3], %s41
      %s43 = sshll.u32 [#allocation8], 4
      %s44 = int_to_ptr.vmem [resolvable:$true] %s43
      %49 = dma.hbm_to_vmem [thread:$0]  %s2, 256, %s44, [#allocation3], 128, 128, 8
    $region13: #{tpu_custom_call.1} parent=1 // pred_fallthru
      _
    // Predicated region
    $region14: #{tpu_custom_call.1} parent=1 // pred_check
      _
    $region15: #{tpu_custom_call.1} parent=1 // pred_check_branch
      %51 = sbr.rel (0) target = $region17
    $region16: #{tpu_custom_call.1} parent=1 // pred_region
      %s53 = ssub.s32 256, 256
      %54 = vsyncadd [#allocation10], %s53
      %s55 = sshll.u32 [#allocation9], 4
      %s56 = int_to_ptr.vmem [resolvable:$true] %s55
      %61 = dma.hbm_to_vmem [thread:$0]  %s3, 256, %s56, [#allocation10], 128, 128, 8
    $region17: #{tpu_custom_call.1} parent=1 // pred_fallthru
      _
    // Predicated region
    $region18: #{tpu_custom_call.1} parent=1 // pred_check
      _
    $region19: #{tpu_custom_call.1} parent=1 // pred_check_branch
      %63 = sbr.rel (0) target = $region21
    $region20: #{tpu_custom_call.1} parent=1 // pred_region
      %64 = dma.done [#allocation4], 16
    $region21: #{tpu_custom_call.1} parent=1 // pred_fallthru
      _
    // Predicated region
    $region22: #{tpu_custom_call.1} parent=1 // pred_check
      _
    $region23: #{tpu_custom_call.1} parent=1 // pred_check_branch
      %66 = sbr.rel (0) target = $region25
    $region24: #{tpu_custom_call.1} parent=1 // pred_region
      %67 = dma.done [#allocation6], 16
    $region25: #{tpu_custom_call.1} parent=1 // pred_fallthru
      _
    // Predicated region
    $region26: #{tpu_custom_call.1} parent=1 // pred_check
      _
    $region27: #{tpu_custom_call.1} parent=1 // pred_check_branch
      %69 = sbr.rel (0) target = $region29
    $region28: #{tpu_custom_call.1} parent=1 // pred_region
      %70 = dma.done [#allocation3], 256
    $region29: #{tpu_custom_call.1} parent=1 // pred_fallthru
      _
    // Predicated region
    $region30: #{tpu_custom_call.1} parent=1 // pred_check
      _
    $region31: #{tpu_custom_call.1} parent=1 // pred_check_branch
      %72 = sbr.rel (0) target = $region33
    $region32: #{tpu_custom_call.1} parent=1 // pred_region
      %73 = dma.done [#allocation10], 256
    $region33: #{tpu_custom_call.1} parent=1 // pred_fallthru
      _
    %74 = sfence
    %s75 = sld [smem:[#allocation2]]
    %s76 = sld [smem:[#allocation2 + $0x1]]
    %s77 = sld [smem:[#allocation2 + $0x2]]
    %s78 = sld [smem:[#allocation2 + $0x3]]
    %v79 = vld [vmem:[#allocation8] sm:$0xff]
    %v80 = vld [vmem:[#allocation8 + $0x8] sm:$0xff]
    %v81 = vadd.f32 %v79, 1.0
    %v83 = vrot.slane %v79, 5
    %v85 = vadd.f32 %v81, %v83
    %v87 = vrot.slane %v80, 2
    %v89 = vadd.f32 %v85, %v87
    %v90 = vmax.f32 %v89, 1e-06
    %v91 = vrsqrt.pop %v90
    %v92 = vmul.f32 %v91, 0.5
    %v93 = vmul.f32 %v90, %v92
    %v94 = vsub.f32 %v80, %v83
    %v96 = vrot.slane %v92, 7
    %v98 = vmul.f32 %v94, %v96
    %v99 = vrot.slane %v80, 6
    %v101 = vsub.f32 %v79, %v99
    %v102 = vrot.slane %v92, 6
    %v104 = vmul.f32 %v101, %v102
    %v105 = vsub.f32 %v79, %v83
    %v106 = vrot.slane %v92, 4
    %v108 = vmul.f32 %v105, %v106
    %v109 = vld [vmem:[#allocation9] sm:$0xff]
    %v110 = vld [vmem:[#allocation9 + $0x8] sm:$0xff]
    %v111 = vadd.f32 %v109, 1.0
    %v113 = vrot.slane %v109, 5
    %v115 = vadd.f32 %v111, %v113
    %v117 = vrot.slane %v110, 2
    %v119 = vadd.f32 %v115, %v117
    %v120 = vmax.f32 %v119, 1e-06
    %v121 = vrsqrt.pop %v120
    %v122 = vmul.f32 %v121, 0.5
    %v123 = vmul.f32 %v120, %v122
    %v124 = vsub.f32 %v110, %v113
    %v126 = vrot.slane %v122, 7
    %v128 = vmul.f32 %v124, %v126
    %v129 = vrot.slane %v110, 6
    %v131 = vsub.f32 %v109, %v129
    %v132 = vrot.slane %v122, 6
    %v134 = vmul.f32 %v131, %v132
    %v135 = vsub.f32 %v109, %v113
    %v136 = vrot.slane %v122, 4
    %v138 = vmul.f32 %v135, %v136
    %v139 = vsub.f32 %v93, %v123
    %v140 = vmul.f32 %v139, %v139
    %v141 = vsub.f32 %v98, %v128
    %v142 = vmul.f32 %v141, %v141
    %v144 = vrot.slane %v142, 1
    %v146 = vadd.f32 %v140, %v144
    %v147 = vsub.f32 %v104, %v134
    %v148 = vmul.f32 %v147, %v147
    %v150 = vrot.slane %v148, 2
    %v152 = vadd.f32 %v146, %v150
    %v153 = vsub.f32 %v108, %v138
    %v154 = vmul.f32 %v153, %v153
    %v156 = vrot.slane %v154, 4
    %v158 = vadd.f32 %v152, %v156
    %v159 = vsub.f32 %v79, %v109
    %v160 = vand.u32 2147483647, %v159
    %v162 = vrot.slane %v160, 4
    %v164 = vadd.f32 %v160, %v162
    %v165 = vsub.f32 %v80, %v110
    %v166 = vand.u32 2147483647, %v165
    %v167 = vadd.f32 %v164, %v166
    %v168 = vlaneseq
    %v169 = vand.u32 %v168, 127
    %vm170 = vcmp.ge.s32.totalorder %v169, 0
    %vm171 = vcmp.lt.s32.totalorder %v169, 8
    %vm172 = vmand %vm170, %vm171
    %v173 = vsel %vm172, %v158, 0.0
    %vm174 = vcmask 319488
    %v175 = vsel %vm174, %v173, 0.0
    %176 = vadd.xlane.f32.xlu0 %v175
    %v177 = vpop.xlane.xlu0 %176
    %v178 = vrot.slane %v177, 4
    %v179 = vadd.f32 %v177, %v178
    %v180 = vrot.slane %v179, 2
    %v181 = vadd.f32 %v179, %v180
    %v182 = vrot.slane %v181, 1
    %v183 = vadd.f32 %v181, %v182
    %s184 = vtos %v183
    %s185 = smul.f32 %s184, 0.03125
    %v186 = vsel %vm172, %v167, 0.0
    %v188 = vrot.slane %v186, 3
    %v190 = vsel %vm174, %v188, 0.0
    %191 = vadd.xlane.f32.xlu0 %v190
    %v192 = vpop.xlane.xlu0 %191
    %v193 = vrot.slane %v192, 4
    %v194 = vadd.f32 %v192, %v193
    %v195 = vrot.slane %v194, 2
    %v196 = vadd.f32 %v194, %v195
    %v197 = vrot.slane %v196, 1
    %v198 = vadd.f32 %v196, %v197
    %s199 = vtos %v198
    %s200 = smul.f32 %s199, 0.041666668
    %s201 = smul.f32 %s77, %s200
    %s202 = sadd.f32 %s201, %s75
    %s203 = smul.f32 %s78, %s185
    %s204 = sadd.f32 %s202, %s203
    %s205 = sadd.f32 %s204, %s76
    %s206 = scalar_lea.smem [#allocation12], 0
    %207 = sst [smem:[%s206]] %s200
    %s208 = scalar_lea.smem [#allocation14], 0
    %209 = sst [smem:[%s208]] %s185
    %s210 = scalar_lea.smem [#allocation15], 0
    %211 = sst [smem:[%s210]] %s205
    %s212 = sld [smem:[#allocation7]]
    %s213 = smul.f32 %s212, %s205
    %s214 = sadd.f32 %s213, 0.0
    %vm215 = vcmp.ge.s32.totalorder %v169, 8
    %vm216 = vcmp.lt.s32.totalorder %v169, 16
    %vm217 = vmand %vm215, %vm216
    %v218 = vsel %vm217, %v158, 0.0
    %v219 = vsel %vm174, %v218, 0.0
    %220 = vadd.xlane.f32.xlu0 %v219
    %v221 = vpop.xlane.xlu0 %220
    %v222 = vrot.slane %v221, 4
    %v223 = vadd.f32 %v221, %v222
    %v224 = vrot.slane %v223, 2
    %v225 = vadd.f32 %v223, %v224
    %v226 = vrot.slane %v225, 1
    %v227 = vadd.f32 %v225, %v226
    %s228 = vtos %v227
    %s229 = smul.f32 %s228, 0.03125
    %v230 = vsel %vm217, %v167, 0.0
    %v232 = vrot.slane %v230, 3
    %v234 = vsel %vm174, %v232, 0.0
    %235 = vadd.xlane.f32.xlu0 %v234
    %v236 = vpop.xlane.xlu0 %235
    %v237 = vrot.slane %v236, 4
    %v238 = vadd.f32 %v236, %v237
    %v239 = vrot.slane %v238, 2
    %v240 = vadd.f32 %v238, %v239
    %v241 = vrot.slane %v240, 1
    %v242 = vadd.f32 %v240, %v241
    %s243 = vtos %v242
    %s244 = smul.f32 %s243, 0.041666668
    %s245 = smul.f32 %s77, %s244
    %s246 = sadd.f32 %s245, %s75
    %s247 = smul.f32 %s78, %s229
    %s248 = sadd.f32 %s246, %s247
    %s249 = sadd.f32 %s248, %s76
    %s250 = scalar_lea.smem [#allocation12], 1
    %251 = sst [smem:[%s250]] %s244
    %s252 = scalar_lea.smem [#allocation14], 1
    %253 = sst [smem:[%s252]] %s229
    %s254 = scalar_lea.smem [#allocation15], 1
    %255 = sst [smem:[%s254]] %s249
    %s256 = sld [smem:[#allocation7 + $0x1]]
    %s257 = smul.f32 %s256, %s249
    %s258 = sadd.f32 %s214, %s257
    %vm259 = vcmp.ge.s32.totalorder %v169, 16
    %vm260 = vcmp.lt.s32.totalorder %v169, 24
    %vm261 = vmand %vm259, %vm260
    %v262 = vsel %vm261, %v158, 0.0
    %v263 = vsel %vm174, %v262, 0.0
    %264 = vadd.xlane.f32.xlu0 %v263
    %v265 = vpop.xlane.xlu0 %264
    %v266 = vrot.slane %v265, 4
    %v267 = vadd.f32 %v265, %v266
    %v268 = vrot.slane %v267, 2
    %v269 = vadd.f32 %v267, %v268
    %v270 = vrot.slane %v269, 1
    %v271 = vadd.f32 %v269, %v270
    %s272 = vtos %v271
    %s273 = smul.f32 %s272, 0.03125
    %v274 = vsel %vm261, %v167, 0.0
    %v276 = vrot.slane %v274, 3
    %v278 = vsel %vm174, %v276, 0.0
    %279 = vadd.xlane.f32.xlu0 %v278
    %v280 = vpop.xlane.xlu0 %279
    %v281 = vrot.slane %v280, 4
    %v282 = vadd.f32 %v280, %v281
    %v283 = vrot.slane %v282, 2
    %v284 = vadd.f32 %v282, %v283
    %v285 = vrot.slane %v284, 1
    %v286 = vadd.f32 %v284, %v285
    %s287 = vtos %v286
    %s288 = smul.f32 %s287, 0.041666668
    %s289 = smul.f32 %s77, %s288
    %s290 = sadd.f32 %s289, %s75
    %s291 = smul.f32 %s78, %s273
    %s292 = sadd.f32 %s290, %s291
    %s293 = sadd.f32 %s292, %s76
    %s294 = scalar_lea.smem [#allocation12], 2
    %295 = sst [smem:[%s294]] %s288
    %s296 = scalar_lea.smem [#allocation14], 2
    %297 = sst [smem:[%s296]] %s273
    %s298 = scalar_lea.smem [#allocation15], 2
    %299 = sst [smem:[%s298]] %s293
    %s300 = sld [smem:[#allocation7 + $0x2]]
    %s301 = smul.f32 %s300, %s293
    %s302 = sadd.f32 %s258, %s301
    %vm303 = vcmp.ge.s32.totalorder %v169, 24
    %vm304 = vcmp.lt.s32.totalorder %v169, 32
    %vm305 = vmand %vm303, %vm304
    %v306 = vsel %vm305, %v158, 0.0
    %v307 = vsel %vm174, %v306, 0.0
    %308 = vadd.xlane.f32.xlu0 %v307
    %v309 = vpop.xlane.xlu0 %308
    %v310 = vrot.slane %v309, 4
    %v311 = vadd.f32 %v309, %v310
    %v312 = vrot.slane %v311, 2
    %v313 = vadd.f32 %v311, %v312
    %v314 = vrot.slane %v313, 1
    %v315 = vadd.f32 %v313, %v314
    %s316 = vtos %v315
    %s317 = smul.f32 %s316, 0.03125
    %v318 = vsel %vm305, %v167, 0.0
    %v320 = vrot.slane %v318, 3
    %v322 = vsel %vm174, %v320, 0.0
    %323 = vadd.xlane.f32.xlu0 %v322
    %v324 = vpop.xlane.xlu0 %323
    %v325 = vrot.slane %v324, 4
    %v326 = vadd.f32 %v324, %v325
    %v327 = vrot.slane %v326, 2
    %v328 = vadd.f32 %v326, %v327
    %v329 = vrot.slane %v328, 1
    %v330 = vadd.f32 %v328, %v329
    %s331 = vtos %v330
    %s332 = smul.f32 %s331, 0.041666668
    %s333 = smul.f32 %s77, %s332
    %s334 = sadd.f32 %s333, %s75
    %s335 = smul.f32 %s78, %s317
    %s336 = sadd.f32 %s334, %s335
    %s337 = sadd.f32 %s336, %s76
    %s338 = scalar_lea.smem [#allocation12], 3
    %339 = sst [smem:[%s338]] %s332
    %s340 = scalar_lea.smem [#allocation14], 3
    %341 = sst [smem:[%s340]] %s317
    %s342 = scalar_lea.smem [#allocation15], 3
    %343 = sst [smem:[%s342]] %s337
    %s344 = sld [smem:[#allocation7 + $0x3]]
    %s345 = smul.f32 %s344, %s337
    %s346 = sadd.f32 %s302, %s345
    %vm347 = vcmp.ge.s32.totalorder %v169, 32
    %vm348 = vcmp.lt.s32.totalorder %v169, 40
    %vm349 = vmand %vm347, %vm348
    %v350 = vsel %vm349, %v158, 0.0
    %v351 = vsel %vm174, %v350, 0.0
    %352 = vadd.xlane.f32.xlu0 %v351
    %v353 = vpop.xlane.xlu0 %352
    %v354 = vrot.slane %v353, 4
    %v355 = vadd.f32 %v353, %v354
    %v356 = vrot.slane %v355, 2
    %v357 = vadd.f32 %v355, %v356
    %v358 = vrot.slane %v357, 1
    %v359 = vadd.f32 %v357, %v358
    %s360 = vtos %v359
    %s361 = smul.f32 %s360, 0.03125
    %v362 = vsel %vm349, %v167, 0.0
    %v364 = vrot.slane %v362, 3
    %v366 = vsel %vm174, %v364, 0.0
    %367 = vadd.xlane.f32.xlu0 %v366
    %v368 = vpop.xlane.xlu0 %367
    %v369 = vrot.slane %v368, 4
    %v370 = vadd.f32 %v368, %v369
    %v371 = vrot.slane %v370, 2
    %v372 = vadd.f32 %v370, %v371
    %v373 = vrot.slane %v372, 1
    %v374 = vadd.f32 %v372, %v373
    %s375 = vtos %v374
    %s376 = smul.f32 %s375, 0.041666668
    %s377 = smul.f32 %s77, %s376
    %s378 = sadd.f32 %s377, %s75
    %s379 = smul.f32 %s78, %s361
    %s380 = sadd.f32 %s378, %s379
    %s381 = sadd.f32 %s380, %s76
    %s382 = scalar_lea.smem [#allocation12], 4
    %383 = sst [smem:[%s382]] %s376
    %s384 = scalar_lea.smem [#allocation14], 4
    %385 = sst [smem:[%s384]] %s361
    %s386 = scalar_lea.smem [#allocation15], 4
    %387 = sst [smem:[%s386]] %s381
    %s388 = sld [smem:[#allocation7 + $0x4]]
    %s389 = smul.f32 %s388, %s381
    %s390 = sadd.f32 %s346, %s389
    %s391 = scalar_lea.smem [#allocation11], 0
    %392 = sst [smem:[%s391]] %s390
    // Predicated region
    $region34: #{tpu_custom_call.1} parent=1 // pred_check
      _
    $region35: #{tpu_custom_call.1} parent=1 // pred_check_branch
      %394 = sbr.rel (0) target = $region37
    $region36: #{tpu_custom_call.1} parent=1 // pred_region
      %s396 = ssub.s32 16, 16
      %397 = vsyncadd [#allocation5], %s396
      %400 = dma.smem_to_hbm [#allocation11], 16, %s4, [#allocation5]
    $region37: #{tpu_custom_call.1} parent=1 // pred_fallthru
      _
    // Predicated region
    $region38: #{tpu_custom_call.1} parent=1 // pred_check
      _
    $region39: #{tpu_custom_call.1} parent=1 // pred_check_branch
      %402 = sbr.rel (0) target = $region41
    $region40: #{tpu_custom_call.1} parent=1 // pred_region
      %s404 = ssub.s32 16, 16
      %405 = vsyncadd [#allocation13], %s404
      %408 = dma.smem_to_hbm [#allocation12], 16, %s5, [#allocation13]
    $region41: #{tpu_custom_call.1} parent=1 // pred_fallthru
      _
    // Predicated region
    $region42: #{tpu_custom_call.1} parent=1 // pred_check
      _
    $region43: #{tpu_custom_call.1} parent=1 // pred_check_branch
      %410 = sbr.rel (0) target = $region45
    $region44: #{tpu_custom_call.1} parent=1 // pred_region
      %s412 = ssub.s32 16, 16
      %413 = vsyncadd [#allocation13], %s412
      %416 = dma.smem_to_hbm [#allocation14], 16, %s6, [#allocation13]
    $region45: #{tpu_custom_call.1} parent=1 // pred_fallthru
      _
    // Predicated region
    $region46: #{tpu_custom_call.1} parent=1 // pred_check
      _
    $region47: #{tpu_custom_call.1} parent=1 // pred_check_branch
      %418 = sbr.rel (0) target = $region49
    $region48: #{tpu_custom_call.1} parent=1 // pred_region
      %s420 = ssub.s32 16, 16
      %421 = vsyncadd [#allocation16], %s420
      %424 = dma.smem_to_hbm [#allocation15], 16, %s7, [#allocation16]
    $region49: #{tpu_custom_call.1} parent=1 // pred_fallthru
      _
    // Predicated region
    $region50: #{tpu_custom_call.1} parent=1 // pred_check
      _
    $region51: #{tpu_custom_call.1} parent=1 // pred_check_branch
      %426 = sbr.rel (0) target = $region53
    $region52: #{tpu_custom_call.1} parent=1 // pred_region
      %427 = dma.done [#allocation5], 16
    $region53: #{tpu_custom_call.1} parent=1 // pred_fallthru
      _
    // Predicated region
    $region54: #{tpu_custom_call.1} parent=1 // pred_check
      _
    $region55: #{tpu_custom_call.1} parent=1 // pred_check_branch
      %429 = sbr.rel (0) target = $region57
    $region56: #{tpu_custom_call.1} parent=1 // pred_region
      %430 = dma.done [#allocation13], 16
    $region57: #{tpu_custom_call.1} parent=1 // pred_fallthru
      _
    // Predicated region
    $region58: #{tpu_custom_call.1} parent=1 // pred_check
      _
    $region59: #{tpu_custom_call.1} parent=1 // pred_check_branch
      %432 = sbr.rel (0) target = $region61
    $region60: #{tpu_custom_call.1} parent=1 // pred_region
      %433 = dma.done [#allocation13], 16
    $region61: #{tpu_custom_call.1} parent=1 // pred_fallthru
      _
    // Predicated region
    $region62: #{tpu_custom_call.1} parent=1 // pred_check
      _
    $region63: #{tpu_custom_call.1} parent=1 // pred_check_branch
      %435 = sbr.rel (0) target = $region65
    $region64: #{tpu_custom_call.1} parent=1 // pred_region
      %436 = dma.done [#allocation16], 16
    $region65: #{tpu_custom_call.1} parent=1 // pred_fallthru
      _
    %437 = sfence
    %438 = vsyncpa [#allocation3], 1
    %439 = vsyncpa [#allocation10], 1
    %440 = vsyncpa [#allocation4], 1
    %441 = vsyncpa [#allocation5], 1
    %442 = vsyncpa [#allocation13], 1
    %443 = vsyncpa [#allocation16], 1
    %444 = vsyncpa [#allocation6], 1

</llo_original>
